<compile_context>
chip_gen: v5e
topology: v5e:2x2
jax: 0.10.0
libtpu: 0.0.40
codegen_flags: <defaults>
</compile_context>

<pallas_src>
import jax
import jax.numpy as jnp
from jax import lax
from jax.experimental import pallas as pl
from jax.experimental.pallas import tpu as pltpu


def _copy_kernel(x_ref, o_ref):
    # Identity copy of the current lane-dense tile.
    o_ref[...] = x_ref[...]


def _round_up(n: int, m: int) -> int:
    return ((n + m - 1) // m) * m


def _pallas_identity_copy(flat_words: jax.Array) -> jax.Array:
    """Materializing identity copy of a flat int32 word buffer via Pallas."""
    n = flat_words.shape[0]
    LANE = 128

    # Widest lane-dense last dim (multiple of 128) that divides n.
    width = 0
    for cand in (8 * LANE, 4 * LANE, 2 * LANE, LANE):
        if n % cand == 0:
            width = cand
            break
    if width == 0:
        # Cannot form a lane-dense 2D view; the reshape-only path is already
        # optimal, so skip the copy.
        return flat_words

    rows = n // width

    # ~2 MiB per block (int32 words): with input + output double-buffered this
    # stays well under the 32 MiB scoped / 64 MiB physical VMEM on v7x.
    tile_rows = min(rows, max(8, (2 * 1024 * 1024) // (4 * width)))
    tile_rows = max(8, (tile_rows // 8) * 8)
    if rows <= tile_rows:
        tile_rows = rows  # block == full array -> always a legal tile shape

    num_blocks = pl.cdiv(rows, tile_rows)

    # Best-effort: make the grid length even so the single "parallel" axis
    # shards evenly across the 2 TensorCores of a v7x chip.
    if num_blocks > 1 and num_blocks % 2 == 1:
        for target in (num_blocks - 1, num_blocks + 1, num_blocks + 3):
            if target < 2:
                continue
            alt = max(8, _round_up(-(-rows // target), 8))
            nb = pl.cdiv(rows, alt)
            if nb % 2 == 0 and alt * width * 4 <= 4 * 1024 * 1024:
                tile_rows, num_blocks = alt, nb
                break

    flat2d = flat_words.reshape(rows, width)
    out2d = pl.pallas_call(
        _copy_kernel,
        out_shape=jax.ShapeDtypeStruct((rows, width), flat2d.dtype),
        grid=(num_blocks,),
        in_specs=[pl.BlockSpec((tile_rows, width), lambda i: (i, 0))],
        out_specs=pl.BlockSpec((tile_rows, width), lambda i: (i, 0)),
        input_output_aliases={0: 0},  # output aliases the donated input buffer
        compiler_params=pltpu.CompilerParams(
            dimension_semantics=("parallel",)),
    )(flat2d)
    return out2d.reshape(n)


def unflatten(x: jax.Array, wh: int, *, materialize: bool = False) -> jax.Array:
    """Pallas/JAX equivalent of Unflatten(wh).forward(x).

    Default path is a pure metadata reshape (zero HBM traffic — same as
    torch .view).  `materialize=True` routes the bytes through a Pallas
    identity-copy kernel for callers that need a freshly written buffer.
    """
    B = x.shape[0]
    total = x.size
    assert total % B == 0
    per_batch = total // B
    assert per_batch % (wh * wh) == 0, (
        f"cannot unflatten {per_batch} elements into (-1, {wh}, {wh})")
    C = per_batch // (wh * wh)
    out_shape = (B, C, wh, wh)

    if not materialize:
        # Fast path: the op is a pure view; XLA lowers this to a bitcast.
        return x.reshape(out_shape)

    itemsize = jnp.dtype(x.dtype).itemsize
    flat = x.reshape(-1)
    if itemsize in (1, 2, 4) and (total * itemsize) % 4 == 0:
        # Dtype-agnostic copy: pack to 32-bit words so sublane alignment is
        # identical for f32/bf16/int8 and stores are always unmasked.
        pack = 4 // itemsize
        if pack == 1:
            words = lax.bitcast_convert_type(flat, jnp.int32)
        else:
            words = lax.bitcast_convert_type(flat.reshape(-1, pack), jnp.int32)
        words = _pallas_identity_copy(words)
        if pack == 1:
            flat = lax.bitcast_convert_type(words, x.dtype)
        else:
            flat = lax.bitcast_convert_type(words, x.dtype).reshape(-1)
    else:
        # TODO(synk): dtypes/sizes that don't pack into 32-bit words keep the
        # pure-reshape path (the op has no compute to tile anyway).
        pass

    return flat.reshape(out_shape)


if __name__ == "__main__":
    key = jax.random.PRNGKey(0)
    # Small NCHW input: batch=2, channels=4, spatial=16x16 -> 1024 elems/batch.
    x = jax.random.normal(key, (2, 4, 16, 16), dtype=jnp.float32)
    wh = 8  # re-chunk each batch into (-1, 8, 8) -> (2, 16, 8, 8)

    # Reference: pure reshape (what torch .view does).
    y_ref = x.reshape(x.shape[0], -1, wh, wh)

    # Fast (default) path: pure metadata reshape.
    y_fast = jax.block_until_ready(unflatten(x, wh))
    # Materializing path: exercises the Pallas identity-copy kernel.
    y_kern = jax.block_until_ready(unflatten(x, wh, materialize=True))

    assert y_fast.shape == (2, 16, 8, 8), y_fast.shape
    assert y_kern.shape == (2, 16, 8, 8), y_kern.shape
    assert y_fast.dtype == x.dtype and y_kern.dtype == x.dtype
    assert bool(jnp.array_equal(y_fast, y_ref))
    assert bool(jnp.array_equal(y_kern, y_ref))

    print("KERNEL_OK")
</pallas_src>

<mosaic_0001>
module attributes {stable_mosaic.version = 11 : i64} {
  func.func @_copy_kernel(%arg0: i32, %arg1: memref<2x1024xi32, #tpu.memory_space<vmem>>, %arg2: memref<2x1024xi32, #tpu.memory_space<vmem>>) attributes {dimension_semantics = [#tpu.dimension_semantics<parallel>], iteration_bounds = array<i64: 1>, scalar_prefetch = 0 : i64, scratch_operands = 0 : i64, tpu.core_type = #tpu.core_type<tc>, window_params = [{transform_indices = @transform_0, window_bounds = array<i64: 2, 1024>}, {transform_indices = @transform_1, window_bounds = array<i64: 2, 1024>}]} {
    %c0 = arith.constant 0 : index
    %c0_0 = arith.constant 0 : index
    %0 = vector.load %arg1[%c0, %c0_0] : memref<2x1024xi32, #tpu.memory_space<vmem>>, vector<2x1024xi32>
    %c0_1 = arith.constant 0 : index
    %c0_2 = arith.constant 0 : index
    %1 = vector.load %arg2[%c0_1, %c0_2] : memref<2x1024xi32, #tpu.memory_space<vmem>>, vector<2x1024xi32>
    tpu.vector_store %arg2[%c0_1, %c0_2], %0 {strides = array<i32>} : memref<2x1024xi32, #tpu.memory_space<vmem>>, vector<2x1024xi32>,
    return
  }
  func.func @transform_0(%arg0: i32) -> (i32, i32) {
    %c0_i32 = arith.constant 0 : i32
    %c0_i32_0 = arith.constant 0 : i32
    return %arg0, %c0_i32 : i32, i32
  }
  func.func @transform_1(%arg0: i32) -> (i32, i32) {
    %c0_i32 = arith.constant 0 : i32
    %c0_i32_0 = arith.constant 0 : i32
    return %arg0, %c0_i32 : i32, i32
  }
}

</mosaic_0001>

<llo_original>
// kernel: tpu_custom_call.1
$region0: #{tpu_custom_call.1}
  #allocation0 [shape = 'u32[]', space=smem, size = 0x4, offset = 0x4, fixed_abs, tag = 'smem constant byte address 0x4 - core index']
  #allocation1 [shape = 'u32[72,128]{1,0:T(1,128)}', space=vmem, size = 0x9000, scoped, tag = 'internal scratch']
  %s0 = inlined_call_operand.hbm [shape: s32[2,1024], index: 0, kind: input, shape index: {}, may-alias: {0,1}]
  %s1 = inlined_call_operand.hbm [shape: s32[2,1024], index: 1, kind: output, shape index: {}, may-alias: {0,1}]
  %s2 = sld [smem:[#allocation0]]
  $region18: #{tpu_custom_call.1} parent=0
    _
  %s4 = ssub.s32 1, %s2
  %s5 = scalar_select 0, %s4, %s2
  $region1: #{tpu_custom_call.1} parent=0
    #allocation2 [shape = 'u8[8192]{0}', space=vmem, size = 0x2000, scoped, tag = 'input window, operand 0, single buffered']
    #allocation3 [shape = 's32[1]{0}', space=sflag, size = 0x4, scoped, tag = 'scoped memory for tpu_custom_call.1']
    #allocation4 [shape = 's32[1]{0}', space=sflag, size = 0x4, scoped, tag = 'scoped memory for tpu_custom_call.1']
    #allocation5 [shape = 'u8[8192]{0}', space=vmem, size = 0x2000, scoped, tag = 'output window, operand 0, single buffered']
    %6 = vsyncpa [#allocation3], 0
    %7 = vsyncpa [#allocation4], 0
    // Predicated region
    $region2: #{tpu_custom_call.1} parent=1 // pred_check
      _
    $region3: #{tpu_custom_call.1} parent=1 // pred_check_branch
      %9 = sbr.rel (0) target = $region5
    $region4: #{tpu_custom_call.1} parent=1 // pred_region
      %11 = vsyncadd [#allocation3], 0
      %s13 = sshll.u32 %s0, 4
      %s14 = int_to_ptr.hbm [resolvable:$true] %s13
      %s15 = sshll.u32 [#allocation2], 4
      %s16 = int_to_ptr.vmem [resolvable:$true] %s15
      %18 = dma.hbm_to_vmem [thread:$0]  %s14, 256, %s16, [#allocation3]
    $region5: #{tpu_custom_call.1} parent=1 // pred_fallthru
      _
    // Predicated region
    $region6: #{tpu_custom_call.1} parent=1 // pred_check
      _
    $region7: #{tpu_custom_call.1} parent=1 // pred_check_branch
      %20 = sbr.rel (0) target = $region9
    $region8: #{tpu_custom_call.1} parent=1 // pred_region
      %22 = dma.done [#allocation3], 256
    $region9: #{tpu_custom_call.1} parent=1 // pred_fallthru
      _
    %v23 = vld [vmem:[#allocation2] sm:$0xff]
    %v24 = vld [vmem:[#allocation2 + $0x8] sm:$0xff]
    %25 = vst [vmem:[#allocation5] sm:$0xff] %v23
    %26 = vst [vmem:[#allocation5 + $0x8] sm:$0xff] %v24
    // Predicated region
    $region10: #{tpu_custom_call.1} parent=1 // pred_check
      _
    $region11: #{tpu_custom_call.1} parent=1 // pred_check_branch
      %28 = sbr.rel (0) target = $region13
    $region12: #{tpu_custom_call.1} parent=1 // pred_region
      %30 = vsyncadd [#allocation4], 0
      %s32 = sshll.u32 [#allocation5], 4
      %s33 = int_to_ptr.vmem [resolvable:$true] %s32
      %s34 = sshll.u32 %s1, 4
      %s35 = int_to_ptr.hbm [resolvable:$true] %s34
      %37 = dma.vmem_to_hbm [thread:$0]  %s33, 256, %s35, [#allocation4]
    $region13: #{tpu_custom_call.1} parent=1 // pred_fallthru
      _
    // Predicated region
    $region14: #{tpu_custom_call.1} parent=1 // pred_check
      _
    $region15: #{tpu_custom_call.1} parent=1 // pred_check_branch
      %39 = sbr.rel (0) target = $region17
    $region16: #{tpu_custom_call.1} parent=1 // pred_region
      %41 = dma.done [#allocation4], 256
    $region17: #{tpu_custom_call.1} parent=1 // pred_fallthru
      _
    %42 = vsyncpa [#allocation3], 1
    %43 = vsyncpa [#allocation4], 1

</llo_original>
